<compile_context>
chip_gen: v5e
topology: v5e:2x2
jax: 0.10.0
libtpu: 0.0.40
codegen_flags: <defaults>
</compile_context>

<pallas_src>
import jax
import jax.numpy as jnp
from jax.experimental import pallas as pl
from jax.experimental.pallas import tpu as pltpu

NUM_INPUT_PARAMS = 9
NUM_CLASSES = 3
HIDDEN = (120, 120, 60)
NUM_LAYERS = 4
PAD = 128                 # common lane-aligned feature width for all layers
BIAS_ROW = PAD - 1        # unused weight row (fan_in <= 120 < 127) holds the bias
BATCH_TILE = 128          # rows per grid step on the large-batch path


def mlp_kernel(x_ref, w_ref, out_ref, h_ref):
    # x_ref  : (Bt, 9)          f32  raw input rows
    # w_ref  : (4, 128, 128)    f32  packed weights; row 127 = bias,
    #                                W[l][127,127] = 1 for hidden layers
    # out_ref: (Bt, 3)          f32  logits
    # h_ref  : (Bt, 128)        f32  VMEM scratch for the padded activation slab
    bt = h_ref.shape[0]

    # Build the padded activation slab in VMEM: lanes 0..8 = x, lane 127 = 1.0
    # (bias lane), everything else 0.
    lane = jax.lax.broadcasted_iota(jnp.int32, (bt, PAD), 1)
    h_ref[...] = jnp.where(lane == BIAS_ROW, 1.0, 0.0).astype(jnp.float32)
    h_ref[:, 0:NUM_INPUT_PARAMS] = x_ref[...]

    h = h_ref[...]
    for l in range(NUM_LAYERS):                      # static unroll
        # MXU matmul; bias comes in via the 1.0 lane * weight row 127.
        h = jnp.dot(h, w_ref[l],
                    preferred_element_type=jnp.float32,
                    precision=jax.lax.Precision.HIGHEST)
        if l < NUM_LAYERS - 1:
            h = jnp.maximum(h, 0.0)                  # ReLU (lane 127 stays 1.0)

    out_ref[...] = h[:, :NUM_CLASSES]                # tiny masked store (Bt, 3)


def pack_params(params):
    """Pad & pack per-layer (w, b) into one f32 (4, 128, 128) weight slab.

    Bias is folded into row BIAS_ROW; hidden layers additionally carry
    W[BIAS_ROW, BIAS_ROW] = 1 so the constant-1 bias lane propagates.
    """
    w_slab = jnp.zeros((NUM_LAYERS, PAD, PAD), jnp.float32)
    for l, (w, b) in enumerate(params):
        fi, fo = w.shape
        w_slab = w_slab.at[l, :fi, :fo].set(w)
        w_slab = w_slab.at[l, BIAS_ROW, :fo].set(b)
        if l < NUM_LAYERS - 1:
            w_slab = w_slab.at[l, BIAS_ROW, BIAS_ROW].set(1.0)
    return w_slab


def _cost(batch):
    return pl.CostEstimate(
        flops=2 * batch * PAD * PAD * NUM_LAYERS,
        transcendentals=0,
        bytes_accessed=(batch * NUM_INPUT_PARAMS * 4
                        + NUM_LAYERS * PAD * PAD * 4
                        + batch * NUM_CLASSES * 4),
    )


_VMEM_LIMIT = 16 * 1024 * 1024  # plenty of headroom on v5e/v6e/v7x (~0.4 MiB used)


@jax.jit
def mlp_forward(x, w_packed):
    B = x.shape[0]

    if B > BATCH_TILE and B % BATCH_TILE == 0:
        # Large batch: tile the batch, keep weights VMEM-resident (constant
        # index_map), shard rows across TensorCores on v7x via "parallel".
        grid = (B // BATCH_TILE,)
        return pl.pallas_call(
            mlp_kernel,
            out_shape=jax.ShapeDtypeStruct((B, NUM_CLASSES), jnp.float32),
            grid_spec=pltpu.PrefetchScalarGridSpec(
                num_scalar_prefetch=0,
                grid=grid,
                in_specs=[
                    pl.BlockSpec((BATCH_TILE, NUM_INPUT_PARAMS),
                                 lambda i: (i, 0)),
                    pl.BlockSpec((NUM_LAYERS, PAD, PAD),
                                 lambda i: (0, 0, 0)),
                ],
                out_specs=pl.BlockSpec((BATCH_TILE, NUM_CLASSES),
                                       lambda i: (i, 0)),
                scratch_shapes=[pltpu.VMEM((BATCH_TILE, PAD), jnp.float32)],
            ),
            compiler_params=pltpu.CompilerParams(
                dimension_semantics=("parallel",),
                vmem_limit_bytes=_VMEM_LIMIT),
            cost_estimate=_cost(B),
        )(x, w_packed)

    # Small / launch-bound batch: single gridless call, whole arrays in VMEM.
    # TODO(synk): batches that are large but not a multiple of BATCH_TILE also
    # take this path; pad-to-multiple + gridded would be better for huge ragged B.
    return pl.pallas_call(
        mlp_kernel,
        out_shape=jax.ShapeDtypeStruct((B, NUM_CLASSES), jnp.float32),
        in_specs=[pl.BlockSpec(memory_space=pltpu.VMEM)] * 2,
        out_specs=pl.BlockSpec(memory_space=pltpu.VMEM),
        scratch_shapes=[pltpu.VMEM((B, PAD), jnp.float32)],
        compiler_params=pltpu.CompilerParams(vmem_limit_bytes=_VMEM_LIMIT),
        cost_estimate=_cost(B),
    )(x, w_packed)


def init_linear(key, fan_in, fan_out):
    # Mimics PyTorch nn.Linear default init: U(-1/sqrt(fan_in), 1/sqrt(fan_in)).
    # Stored as (in, out) so forward is y = x @ W + b (== x @ W_pt.T + b).
    kw, kb = jax.random.split(key)
    bound = 1.0 / (fan_in ** 0.5)
    w = jax.random.uniform(kw, (fan_in, fan_out), jnp.float32, -bound, bound)
    b = jax.random.uniform(kb, (fan_out,), jnp.float32, -bound, bound)
    return w, b


def reference_forward(x, params):
    # Pure-JAX f32 reference matching the PyTorch module's forward semantics.
    h = x
    for i, (w, b) in enumerate(params):
        h = jnp.dot(h, w, precision=jax.lax.Precision.HIGHEST) + b
        if i < len(params) - 1:
            h = jnp.maximum(h, 0.0)
    return h


if __name__ == "__main__":
    root = jax.random.PRNGKey(0)
    kx_small, kx_big, k1, k2, k3, k4 = jax.random.split(root, 6)

    params = (
        init_linear(k1, NUM_INPUT_PARAMS, HIDDEN[0]),
        init_linear(k2, HIDDEN[0], HIDDEN[1]),
        init_linear(k3, HIDDEN[1], HIDDEN[2]),
        init_linear(k4, HIDDEN[2], NUM_CLASSES),
    )
    w_packed = pack_params(params)

    # Small batch: exercises the gridless (launch-bound) path.
    x_small = jax.random.normal(kx_small, (8, NUM_INPUT_PARAMS), jnp.float32)
    out_small = jax.block_until_ready(mlp_forward(x_small, w_packed))
    ref_small = reference_forward(x_small, params)
    assert out_small.shape == (8, NUM_CLASSES)
    assert jnp.allclose(out_small, ref_small, atol=2e-3, rtol=2e-3), (
        f"small-batch max abs err {jnp.max(jnp.abs(out_small - ref_small))}")

    # Larger batch: exercises the gridded path (parallel batch axis, resident weights).
    x_big = jax.random.normal(kx_big, (256, NUM_INPUT_PARAMS), jnp.float32)
    out_big = jax.block_until_ready(mlp_forward(x_big, w_packed))
    ref_big = reference_forward(x_big, params)
    assert out_big.shape == (256, NUM_CLASSES)
    assert jnp.allclose(out_big, ref_big, atol=2e-3, rtol=2e-3), (
        f"big-batch max abs err {jnp.max(jnp.abs(out_big - ref_big))}")

    print("KERNEL_OK")
</pallas_src>

<mosaic_0001>
module attributes {stable_mosaic.version = 11 : i64} {
  func.func @mlp_kernel(%arg0: memref<8x9xf32, #tpu.memory_space<vmem>>, %arg1: memref<4x128x128xf32, #tpu.memory_space<vmem>>, %arg2: memref<8x3xf32, #tpu.memory_space<vmem>>, %arg3: memref<8x128xf32, #tpu.memory_space<vmem>>) attributes {dimension_semantics = [], scalar_prefetch = 0 : i64, scratch_operands = 1 : i64, tpu.core_type = #tpu.core_type<tc>} {
    %0 = tpu.iota {dimensions = array<i32: 1>} : vector<8x128xi32>
    %c127_i32 = arith.constant 127 : i32
    %1 = vector.broadcast %c127_i32 : i32 to vector<8x128xi32>
    %2 = arith.cmpi eq, %0, %1 : vector<8x128xi32>
    %cst = arith.constant 1.000000e+00 : f32
    %cst_0 = arith.constant 0.000000e+00 : f32
    %3 = vector.broadcast %cst : f32 to vector<8x128xf32>
    %4 = vector.broadcast %cst_0 : f32 to vector<8x128xf32>
    %5 = arith.select %2, %3, %4 : vector<8x128xi1>, vector<8x128xf32>
    %c0 = arith.constant 0 : index
    %c0_1 = arith.constant 0 : index
    %6 = vector.load %arg3[%c0, %c0_1] : memref<8x128xf32, #tpu.memory_space<vmem>>, vector<8x128xf32>
    tpu.vector_store %arg3[%c0, %c0_1], %5 {strides = array<i32>} : memref<8x128xf32, #tpu.memory_space<vmem>>, vector<8x128xf32>,
    %c0_2 = arith.constant 0 : index
    %c0_3 = arith.constant 0 : index
    %7 = vector.load %arg0[%c0_2, %c0_3] : memref<8x9xf32, #tpu.memory_space<vmem>>, vector<8x9xf32>
    %c0_4 = arith.constant 0 : index
    %c0_5 = arith.constant 0 : index
    %8 = vector.load %arg3[%c0_4, %c0_5] : memref<8x128xf32, #tpu.memory_space<vmem>>, vector<8x9xf32>
    tpu.vector_store %arg3[%c0_4, %c0_5], %7 {strides = array<i32>} : memref<8x128xf32, #tpu.memory_space<vmem>>, vector<8x9xf32>,
    %c0_6 = arith.constant 0 : index
    %c0_7 = arith.constant 0 : index
    %9 = vector.load %arg3[%c0_6, %c0_7] : memref<8x128xf32, #tpu.memory_space<vmem>>, vector<8x128xf32>
    %c0_8 = arith.constant 0 : index
    %c0_9 = arith.constant 0 : index
    %c0_10 = arith.constant 0 : index
    %10 = vector.load %arg1[%c0_8, %c0_9, %c0_10] : memref<4x128x128xf32, #tpu.memory_space<vmem>>, vector<1x128x128xf32>
    %11 = vector.shape_cast %10 : vector<1x128x128xf32> to vector<128x128xf32>
    %cst_11 = arith.constant dense<0.000000e+00> : vector<8x128xf32>
    %12 = tpu.matmul %9, %11, %cst_11 {dimension_numbers = #tpu.dot_dimension_numbers<[1], [0], [0], [1], [0, 0, 1, 1], [], []>, precision = #tpu.contract_precision<fp32>} : vector<8x128xf32>, vector<128x128xf32>, vector<8x128xf32> -> vector<8x128xf32>
    %cst_12 = arith.constant 0.000000e+00 : f32
    %13 = vector.broadcast %cst_12 : f32 to vector<8x128xf32>
    %14 = arith.maximumf %12, %13 : vector<8x128xf32>
    %c1 = arith.constant 1 : index
    %c0_13 = arith.constant 0 : index
    %c0_14 = arith.constant 0 : index
    %15 = vector.load %arg1[%c1, %c0_13, %c0_14] : memref<4x128x128xf32, #tpu.memory_space<vmem>>, vector<1x128x128xf32>
    %16 = vector.shape_cast %15 : vector<1x128x128xf32> to vector<128x128xf32>
    %cst_15 = arith.constant dense<0.000000e+00> : vector<8x128xf32>
    %17 = tpu.matmul %14, %16, %cst_15 {dimension_numbers = #tpu.dot_dimension_numbers<[1], [0], [0], [1], [0, 0, 1, 1], [], []>, precision = #tpu.contract_precision<fp32>} : vector<8x128xf32>, vector<128x128xf32>, vector<8x128xf32> -> vector<8x128xf32>
    %cst_16 = arith.constant 0.000000e+00 : f32
    %18 = vector.broadcast %cst_16 : f32 to vector<8x128xf32>
    %19 = arith.maximumf %17, %18 : vector<8x128xf32>
    %c2 = arith.constant 2 : index
    %c0_17 = arith.constant 0 : index
    %c0_18 = arith.constant 0 : index
    %20 = vector.load %arg1[%c2, %c0_17, %c0_18] : memref<4x128x128xf32, #tpu.memory_space<vmem>>, vector<1x128x128xf32>
    %21 = vector.shape_cast %20 : vector<1x128x128xf32> to vector<128x128xf32>
    %cst_19 = arith.constant dense<0.000000e+00> : vector<8x128xf32>
    %22 = tpu.matmul %19, %21, %cst_19 {dimension_numbers = #tpu.dot_dimension_numbers<[1], [0], [0], [1], [0, 0, 1, 1], [], []>, precision = #tpu.contract_precision<fp32>} : vector<8x128xf32>, vector<128x128xf32>, vector<8x128xf32> -> vector<8x128xf32>
    %cst_20 = arith.constant 0.000000e+00 : f32
    %23 = vector.broadcast %cst_20 : f32 to vector<8x128xf32>
    %24 = arith.maximumf %22, %23 : vector<8x128xf32>
    %c3 = arith.constant 3 : index
    %c0_21 = arith.constant 0 : index
    %c0_22 = arith.constant 0 : index
    %25 = vector.load %arg1[%c3, %c0_21, %c0_22] : memref<4x128x128xf32, #tpu.memory_space<vmem>>, vector<1x128x128xf32>
    %26 = vector.shape_cast %25 : vector<1x128x128xf32> to vector<128x128xf32>
    %cst_23 = arith.constant dense<0.000000e+00> : vector<8x128xf32>
    %27 = tpu.matmul %24, %26, %cst_23 {dimension_numbers = #tpu.dot_dimension_numbers<[1], [0], [0], [1], [0, 0, 1, 1], [], []>, precision = #tpu.contract_precision<fp32>} : vector<8x128xf32>, vector<128x128xf32>, vector<8x128xf32> -> vector<8x128xf32>
    %28 = vector.extract_strided_slice %27 {offsets = [0, 0], sizes = [8, 3], strides = [1, 1]} : vector<8x128xf32> to vector<8x3xf32>
    %c0_24 = arith.constant 0 : index
    %c0_25 = arith.constant 0 : index
    %29 = vector.load %arg2[%c0_24, %c0_25] : memref<8x3xf32, #tpu.memory_space<vmem>>, vector<8x3xf32>
    tpu.vector_store %arg2[%c0_24, %c0_25], %28 {strides = array<i32>} : memref<8x3xf32, #tpu.memory_space<vmem>>, vector<8x3xf32>,
    return
  }
}

</mosaic_0001>

<llo_original>
// kernel: mlp_forward.1
$region0: #{mlp_forward.1}
  #allocation0 [shape = 'u32[]', space=smem, size = 0x4, offset = 0x4, fixed_abs, tag = 'smem constant byte address 0x4 - core index']
  #allocation1 [shape = 'u32[72,128]{1,0:T(1,128)}', space=vmem, size = 0x9000, scoped, tag = 'internal scratch']
  #allocation2 [shape = 'f32[8,128]{1,0:T(8,128)}', space=vmem, size = 0x1000, scoped, tag = 'scratch operand']
  %s0 = inlined_call_operand.hbm [shape: f32[8,9], index: 0, kind: input, shape index: {}]
  %s1 = inlined_call_operand.hbm [shape: f32[4,128,128], index: 1, kind: input, shape index: {}]
  %s2 = inlined_call_operand.vmem [shape: f32[8,3], index: 2, kind: output, shape index: {}]
  %s3 = sld [smem:[#allocation0]]
  $region26: #{mlp_forward.1} parent=0
    _
  %s5 = ssub.s32 1, %s3
  %s6 = scalar_select 0, %s5, %s3
  $region1: #{mlp_forward.1} parent=0
    #allocation3 [shape = 'u8[4096]{0}', space=vmem, size = 0x1000, scoped, tag = 'input window, operand 0, single buffered']
    #allocation4 [shape = 's32[1]{0}', space=sflag, size = 0x4, scoped, tag = 'scoped memory for mlp_forward.1']
    #allocation5 [shape = 'u8[262144]{0}', space=vmem, size = 0x40000, scoped, tag = 'input window, operand 1, single buffered']
    #allocation6 [shape = 's32[1]{0}', space=sflag, size = 0x4, scoped, tag = 'scoped memory for mlp_forward.1']
    %7 = vsyncpa [#allocation4], 0
    %8 = vsyncpa [#allocation6], 0
    // Predicated region
    $region2: #{mlp_forward.1} parent=1 // pred_check
      _
    $region3: #{mlp_forward.1} parent=1 // pred_check_branch
      %10 = sbr.rel (0) target = $region5
    $region4: #{mlp_forward.1} parent=1 // pred_region
      %12 = vsyncadd [#allocation4], 0
      %s14 = sshll.u32 %s0, 4
      %s15 = int_to_ptr.hbm [resolvable:$true] %s14
      %s16 = sshll.u32 [#allocation3], 4
      %s17 = int_to_ptr.vmem [resolvable:$true] %s16
      %19 = dma.hbm_to_vmem [thread:$0]  %s15, 128, %s17, [#allocation4]
    $region5: #{mlp_forward.1} parent=1 // pred_fallthru
      _
    // Predicated region
    $region6: #{mlp_forward.1} parent=1 // pred_check
      _
    $region7: #{mlp_forward.1} parent=1 // pred_check_branch
      %21 = sbr.rel (0) target = $region9
    $region8: #{mlp_forward.1} parent=1 // pred_region
      %23 = vsyncadd [#allocation6], 0
      %s24 = sshll.u32 %s1, 4
      %s25 = int_to_ptr.hbm [resolvable:$true] %s24
      %s26 = sshll.u32 [#allocation5], 4
      %s27 = int_to_ptr.vmem [resolvable:$true] %s26
      %32 = dma.hbm_to_vmem [thread:$0]  %s25, 8192, %s27, [#allocation6], 128, 128, 8
    $region9: #{mlp_forward.1} parent=1 // pred_fallthru
      _
    // Predicated region
    $region10: #{mlp_forward.1} parent=1 // pred_check
      _
    $region11: #{mlp_forward.1} parent=1 // pred_check_branch
      %34 = sbr.rel (0) target = $region13
    $region12: #{mlp_forward.1} parent=1 // pred_region
      %36 = dma.done [#allocation4], 128
    $region13: #{mlp_forward.1} parent=1 // pred_fallthru
      _
    // Predicated region
    $region14: #{mlp_forward.1} parent=1 // pred_check
      _
    $region15: #{mlp_forward.1} parent=1 // pred_check_branch
      %38 = sbr.rel (0) target = $region17
    $region16: #{mlp_forward.1} parent=1 // pred_region
      %40 = dma.done [#allocation6], 8192
    $region17: #{mlp_forward.1} parent=1 // pred_fallthru
      _
    %v41 = vlaneseq
    %v42 = vand.u32 %v41, 127
    %vm43 = vcmp.eq.s32.totalorder %v42, 127
    %v44 = vsel %vm43, 1.0, 0.0
    %45 = vst [vmem:[#allocation2] sm:$0xff] %v44
    %v46 = vld [vmem:[#allocation3] sm:$0xff]
    %vm47 = vcmask 72704
    %48 = vst.msk [vmem:[#allocation2] sm:$0xff] %vm47, %v46
    %v49 = vld [vmem:[#allocation2] sm:$0xff]
    %v50 = vld [vmem:[#allocation5] sm:$0xff]
    %v51 = vld [vmem:[#allocation5 + $0x8] sm:$0xff]
    %v52 = vld [vmem:[#allocation5 + $0x10] sm:$0xff]
    %v53 = vld [vmem:[#allocation5 + $0x18] sm:$0xff]
    %v54 = vld [vmem:[#allocation5 + $0x20] sm:$0xff]
    %v55 = vld [vmem:[#allocation5 + $0x28] sm:$0xff]
    %v56 = vld [vmem:[#allocation5 + $0x30] sm:$0xff]
    %v57 = vld [vmem:[#allocation5 + $0x38] sm:$0xff]
    %v58 = vld [vmem:[#allocation5 + $0x40] sm:$0xff]
    %v59 = vld [vmem:[#allocation5 + $0x48] sm:$0xff]
    %v60 = vld [vmem:[#allocation5 + $0x50] sm:$0xff]
    %v61 = vld [vmem:[#allocation5 + $0x58] sm:$0xff]
    %v62 = vld [vmem:[#allocation5 + $0x60] sm:$0xff]
    %v63 = vld [vmem:[#allocation5 + $0x68] sm:$0xff]
    %v64 = vld [vmem:[#allocation5 + $0x70] sm:$0xff]
    %v65 = vld [vmem:[#allocation5 + $0x78] sm:$0xff]
    %v66 = vand.u32 %v65, 4294901760
    %67 = vmatpush.msra.mxu0 %v66
    %v68 = vand.u32 %v64, 4294901760
    %69 = vmatpush.msra.mxu0 %v68
    %v70 = vand.u32 %v63, 4294901760
    %71 = vmatpush.msra.mxu0 %v70
    %v72 = vand.u32 %v62, 4294901760
    %73 = vmatpush.msra.mxu0 %v72
    %v74 = vand.u32 %v61, 4294901760
    %75 = vmatpush.msra.mxu0 %v74
    %v76 = vand.u32 %v60, 4294901760
    %77 = vmatpush.msra.mxu0 %v76
    %v78 = vand.u32 %v59, 4294901760
    %79 = vmatpush.msra.mxu0 %v78
    %v80 = vand.u32 %v58, 4294901760
    %81 = vmatpush.msra.mxu0 %v80
    %v82 = vand.u32 %v57, 4294901760
    %83 = vmatpush.msra.mxu0 %v82
    %v84 = vand.u32 %v56, 4294901760
    %85 = vmatpush.msra.mxu0 %v84
    %v86 = vand.u32 %v55, 4294901760
    %87 = vmatpush.msra.mxu0 %v86
    %v88 = vand.u32 %v54, 4294901760
    %89 = vmatpush.msra.mxu0 %v88
    %v90 = vand.u32 %v53, 4294901760
    %91 = vmatpush.msra.mxu0 %v90
    %v92 = vand.u32 %v52, 4294901760
    %93 = vmatpush.msra.mxu0 %v92
    %v94 = vand.u32 %v51, 4294901760
    %95 = vmatpush.msra.mxu0 %v94
    %v96 = vand.u32 %v50, 4294901760
    %97 = vmatpush.msra.mxu0 %v96
    %v98 = vand.u32 %v49, 4294901760
    %v99 = vsub.f32 %v49, %v98
    %v100 = vand.u32 %v99, 4294901760
    %v101 = vsub.f32 %v99, %v100
    %v102 = vand.u32 %v101, 4294901760
    %103 = vmatmul.f32.gmra.mxu0 %v102
    %v104 = vpop.f32.mrf.mxu0
    %v105 = vadd.f32 0.0, %v104
    %106 = vdwg.mxu0
    %v107 = vand.u32 %v65, 4294901760
    %v108 = vsub.f32 %v65, %v107
    %v109 = vand.u32 %v108, 4294901760
    %v110 = vsub.f32 %v108, %v109
    %v111 = vand.u32 %v110, 4294901760
    %112 = vmatpush.msra.mxu0 %v111
    %v113 = vand.u32 %v64, 4294901760
    %v114 = vsub.f32 %v64, %v113
    %v115 = vand.u32 %v114, 4294901760
    %v116 = vsub.f32 %v114, %v115
    %v117 = vand.u32 %v116, 4294901760
    %118 = vmatpush.msra.mxu0 %v117
    %v119 = vand.u32 %v63, 4294901760
    %v120 = vsub.f32 %v63, %v119
    %v121 = vand.u32 %v120, 4294901760
    %v122 = vsub.f32 %v120, %v121
    %v123 = vand.u32 %v122, 4294901760
    %124 = vmatpush.msra.mxu0 %v123
    %v125 = vand.u32 %v62, 4294901760
    %v126 = vsub.f32 %v62, %v125
    %v127 = vand.u32 %v126, 4294901760
    %v128 = vsub.f32 %v126, %v127
    %v129 = vand.u32 %v128, 4294901760
    %130 = vmatpush.msra.mxu0 %v129
    %v131 = vand.u32 %v61, 4294901760
    %v132 = vsub.f32 %v61, %v131
    %v133 = vand.u32 %v132, 4294901760
    %v134 = vsub.f32 %v132, %v133
    %v135 = vand.u32 %v134, 4294901760
    %136 = vmatpush.msra.mxu0 %v135
    %v137 = vand.u32 %v60, 4294901760
    %v138 = vsub.f32 %v60, %v137
    %v139 = vand.u32 %v138, 4294901760
    %v140 = vsub.f32 %v138, %v139
    %v141 = vand.u32 %v140, 4294901760
    %142 = vmatpush.msra.mxu0 %v141
    %v143 = vand.u32 %v59, 4294901760
    %v144 = vsub.f32 %v59, %v143
    %v145 = vand.u32 %v144, 4294901760
    %v146 = vsub.f32 %v144, %v145
    %v147 = vand.u32 %v146, 4294901760
    %148 = vmatpush.msra.mxu0 %v147
    %v149 = vand.u32 %v58, 4294901760
    %v150 = vsub.f32 %v58, %v149
    %v151 = vand.u32 %v150, 4294901760
    %v152 = vsub.f32 %v150, %v151
    %v153 = vand.u32 %v152, 4294901760
    %154 = vmatpush.msra.mxu0 %v153
    %v155 = vand.u32 %v57, 4294901760
    %v156 = vsub.f32 %v57, %v155
    %v157 = vand.u32 %v156, 4294901760
    %v158 = vsub.f32 %v156, %v157
    %v159 = vand.u32 %v158, 4294901760
    %160 = vmatpush.msra.mxu0 %v159
    %v161 = vand.u32 %v56, 4294901760
    %v162 = vsub.f32 %v56, %v161
    %v163 = vand.u32 %v162, 4294901760
    %v164 = vsub.f32 %v162, %v163
    %v165 = vand.u32 %v164, 4294901760
    %166 = vmatpush.msra.mxu0 %v165
    %v167 = vand.u32 %v55, 4294901760
    %v168 = vsub.f32 %v55, %v167
    %v169 = vand.u32 %v168, 4294901760
    %v170 = vsub.f32 %v168, %v169
    %v171 = vand.u32 %v170, 4294901760
    %172 = vmatpush.msra.mxu0 %v171
    %v173 = vand.u32 %v54, 4294901760
    %v174 = vsub.f32 %v54, %v173
    %v175 = vand.u32 %v174, 4294901760
    %v176 = vsub.f32 %v174, %v175
    %v177 = vand.u32 %v176, 4294901760
    %178 = vmatpush.msra.mxu0 %v177
    %v179 = vand.u32 %v53, 4294901760
    %v180 = vsub.f32 %v53, %v179
    %v181 = vand.u32 %v180, 4294901760
    %v182 = vsub.f32 %v180, %v181
    %v183 = vand.u32 %v182, 4294901760
    %184 = vmatpush.msra.mxu0 %v183
    %v185 = vand.u32 %v52, 4294901760
    %v186 = vsub.f32 %v52, %v185
    %v187 = vand.u32 %v186, 4294901760
    %v188 = vsub.f32 %v186, %v187
    %v189 = vand.u32 %v188, 4294901760
    %190 = vmatpush.msra.mxu0 %v189
    %v191 = vand.u32 %v51, 4294901760
    %v192 = vsub.f32 %v51, %v191
    %v193 = vand.u32 %v192, 4294901760
    %v194 = vsub.f32 %v192, %v193
    %v195 = vand.u32 %v194, 4294901760
    %196 = vmatpush.msra.mxu0 %v195
    %v197 = vand.u32 %v50, 4294901760
    %v198 = vsub.f32 %v50, %v197
    %v199 = vand.u32 %v198, 4294901760
    %v200 = vsub.f32 %v198, %v199
    %v201 = vand.u32 %v200, 4294901760
    %202 = vmatpush.msra.mxu0 %v201
    %v203 = vand.u32 %v49, 4294901760
    %204 = vmatmul.f32.gmra.mxu0 %v203
    %v205 = vpop.f32.mrf.mxu0
    %v206 = vadd.f32 %v105, %v205
    %207 = vdwg.mxu0
    %v208 = vand.u32 %v65, 4294901760
    %v209 = vsub.f32 %v65, %v208
    %210 = vmatpush.msra.mxu0 %v209
    %v211 = vand.u32 %v64, 4294901760
    %v212 = vsub.f32 %v64, %v211
    %213 = vmatpush.msra.mxu0 %v212
    %v214 = vand.u32 %v63, 4294901760
    %v215 = vsub.f32 %v63, %v214
    %216 = vmatpush.msra.mxu0 %v215
    %v217 = vand.u32 %v62, 4294901760
    %v218 = vsub.f32 %v62, %v217
    %219 = vmatpush.msra.mxu0 %v218
    %v220 = vand.u32 %v61, 4294901760
    %v221 = vsub.f32 %v61, %v220
    %222 = vmatpush.msra.mxu0 %v221
    %v223 = vand.u32 %v60, 4294901760
    %v224 = vsub.f32 %v60, %v223
    %225 = vmatpush.msra.mxu0 %v224
    %v226 = vand.u32 %v59, 4294901760
    %v227 = vsub.f32 %v59, %v226
    %228 = vmatpush.msra.mxu0 %v227
    %v229 = vand.u32 %v58, 4294901760
    %v230 = vsub.f32 %v58, %v229
    %231 = vmatpush.msra.mxu0 %v230
    %v232 = vand.u32 %v57, 4294901760
    %v233 = vsub.f32 %v57, %v232
    %234 = vmatpush.msra.mxu0 %v233
    %v235 = vand.u32 %v56, 4294901760
    %v236 = vsub.f32 %v56, %v235
    %237 = vmatpush.msra.mxu0 %v236
    %v238 = vand.u32 %v55, 4294901760
    %v239 = vsub.f32 %v55, %v238
    %240 = vmatpush.msra.mxu0 %v239
    %v241 = vand.u32 %v54, 4294901760
    %v242 = vsub.f32 %v54, %v241
    %243 = vmatpush.msra.mxu0 %v242
    %v244 = vand.u32 %v53, 4294901760
    %v245 = vsub.f32 %v53, %v244
    %246 = vmatpush.msra.mxu0 %v245
    %v247 = vand.u32 %v52, 4294901760
    %v248 = vsub.f32 %v52, %v247
    %249 = vmatpush.msra.mxu0 %v248
    %v250 = vand.u32 %v51, 4294901760
    %v251 = vsub.f32 %v51, %v250
    %252 = vmatpush.msra.mxu0 %v251
    %v253 = vand.u32 %v50, 4294901760
    %v254 = vsub.f32 %v50, %v253
    %255 = vmatpush.msra.mxu0 %v254
    %v256 = vand.u32 %v49, 4294901760
    %v257 = vsub.f32 %v49, %v256
    %258 = vmatmul.f32.gmra.mxu0 %v257
    %v259 = vpop.f32.mrf.mxu0
    %v260 = vadd.f32 %v206, %v259
    %261 = vdwg.mxu0
    %v262 = vand.u32 %v65, 4294901760
    %263 = vmatpush.msra.mxu0 %v262
    %v264 = vand.u32 %v64, 4294901760
    %265 = vmatpush.msra.mxu0 %v264
    %v266 = vand.u32 %v63, 4294901760
    %267 = vmatpush.msra.mxu0 %v266
    %v268 = vand.u32 %v62, 4294901760
    %269 = vmatpush.msra.mxu0 %v268
    %v270 = vand.u32 %v61, 4294901760
    %271 = vmatpush.msra.mxu0 %v270
    %v272 = vand.u32 %v60, 4294901760
    %273 = vmatpush.msra.mxu0 %v272
    %v274 = vand.u32 %v59, 4294901760
    %275 = vmatpush.msra.mxu0 %v274
    %v276 = vand.u32 %v58, 4294901760
    %277 = vmatpush.msra.mxu0 %v276
    %v278 = vand.u32 %v57, 4294901760
    %279 = vmatpush.msra.mxu0 %v278
    %v280 = vand.u32 %v56, 4294901760
    %281 = vmatpush.msra.mxu0 %v280
    %v282 = vand.u32 %v55, 4294901760
    %283 = vmatpush.msra.mxu0 %v282
    %v284 = vand.u32 %v54, 4294901760
    %285 = vmatpush.msra.mxu0 %v284
    %v286 = vand.u32 %v53, 4294901760
    %287 = vmatpush.msra.mxu0 %v286
    %v288 = vand.u32 %v52, 4294901760
    %289 = vmatpush.msra.mxu0 %v288
    %v290 = vand.u32 %v51, 4294901760
    %291 = vmatpush.msra.mxu0 %v290
    %v292 = vand.u32 %v50, 4294901760
    %293 = vmatpush.msra.mxu0 %v292
    %v294 = vand.u32 %v49, 4294901760
    %v295 = vsub.f32 %v49, %v294
    %v296 = vand.u32 %v295, 4294901760
    %297 = vmatmul.f32.gmra.mxu0 %v296
    %v298 = vpop.f32.mrf.mxu0
    %v299 = vadd.f32 %v260, %v298
    %300 = vdwg.mxu0
    %v301 = vand.u32 %v65, 4294901760
    %v302 = vsub.f32 %v65, %v301
    %v303 = vand.u32 %v302, 4294901760
    %304 = vmatpush.msra.mxu0 %v303
    %v305 = vand.u32 %v64, 4294901760
    %v306 = vsub.f32 %v64, %v305
    %v307 = vand.u32 %v306, 4294901760
    %308 = vmatpush.msra.mxu0 %v307
    %v309 = vand.u32 %v63, 4294901760
    %v310 = vsub.f32 %v63, %v309
    %v311 = vand.u32 %v310, 4294901760
    %312 = vmatpush.msra.mxu0 %v311
    %v313 = vand.u32 %v62, 4294901760
    %v314 = vsub.f32 %v62, %v313
    %v315 = vand.u32 %v314, 4294901760
    %316 = vmatpush.msra.mxu0 %v315
    %v317 = vand.u32 %v61, 4294901760
    %v318 = vsub.f32 %v61, %v317
    %v319 = vand.u32 %v318, 4294901760
    %320 = vmatpush.msra.mxu0 %v319
    %v321 = vand.u32 %v60, 4294901760
    %v322 = vsub.f32 %v60, %v321
    %v323 = vand.u32 %v322, 4294901760
    %324 = vmatpush.msra.mxu0 %v323
    %v325 = vand.u32 %v59, 4294901760
    %v326 = vsub.f32 %v59, %v325
    %v327 = vand.u32 %v326, 4294901760
    %328 = vmatpush.msra.mxu0 %v327
    %v329 = vand.u32 %v58, 4294901760
    %v330 = vsub.f32 %v58, %v329
    %v331 = vand.u32 %v330, 4294901760
    %332 = vmatpush.msra.mxu0 %v331
    %v333 = vand.u32 %v57, 4294901760
    %v334 = vsub.f32 %v57, %v333
    %v335 = vand.u32 %v334, 4294901760
    %336 = vmatpush.msra.mxu0 %v335
    %v337 = vand.u32 %v56, 4294901760
    %v338 = vsub.f32 %v56, %v337
    %v339 = vand.u32 %v338, 4294901760
    %340 = vmatpush.msra.mxu0 %v339
    %v341 = vand.u32 %v55, 4294901760
    %v342 = vsub.f32 %v55, %v341
    %v343 = vand.u32 %v342, 4294901760
    %344 = vmatpush.msra.mxu0 %v343
    %v345 = vand.u32 %v54, 4294901760
    %v346 = vsub.f32 %v54, %v345
    %v347 = vand.u32 %v346, 4294901760
    %348 = vmatpush.msra.mxu0 %v347
    %v349 = vand.u32 %v53, 4294901760
    %v350 = vsub.f32 %v53, %v349
    %v351 = vand.u32 %v350, 4294901760
    %352 = vmatpush.msra.mxu0 %v351
    %v353 = vand.u32 %v52, 4294901760
    %v354 = vsub.f32 %v52, %v353
    %v355 = vand.u32 %v354, 4294901760
    %356 = vmatpush.msra.mxu0 %v355
    %v357 = vand.u32 %v51, 4294901760
    %v358 = vsub.f32 %v51, %v357
    %v359 = vand.u32 %v358, 4294901760
    %360 = vmatpush.msra.mxu0 %v359
    %v361 = vand.u32 %v50, 4294901760
    %v362 = vsub.f32 %v50, %v361
    %v363 = vand.u32 %v362, 4294901760
    %364 = vmatpush.msra.mxu0 %v363
    %v365 = vand.u32 %v49, 4294901760
    %366 = vmatmul.f32.gmra.mxu0 %v365
    %v367 = vpop.f32.mrf.mxu0
    %v368 = vadd.f32 %v299, %v367
    %369 = vdwg.mxu0
    %v370 = vand.u32 %v65, 4294901760
    %371 = vmatpush.msra.mxu0 %v370
    %v372 = vand.u32 %v64, 4294901760
    %373 = vmatpush.msra.mxu0 %v372
    %v374 = vand.u32 %v63, 4294901760
    %375 = vmatpush.msra.mxu0 %v374
    %v376 = vand.u32 %v62, 4294901760
    %377 = vmatpush.msra.mxu0 %v376
    %v378 = vand.u32 %v61, 4294901760
    %379 = vmatpush.msra.mxu0 %v378
    %v380 = vand.u32 %v60, 4294901760
    %381 = vmatpush.msra.mxu0 %v380
    %v382 = vand.u32 %v59, 4294901760
    %383 = vmatpush.msra.mxu0 %v382
    %v384 = vand.u32 %v58, 4294901760
    %385 = vmatpush.msra.mxu0 %v384
    %v386 = vand.u32 %v57, 4294901760
    %387 = vmatpush.msra.mxu0 %v386
    %v388 = vand.u32 %v56, 4294901760
    %389 = vmatpush.msra.mxu0 %v388
    %v390 = vand.u32 %v55, 4294901760
    %391 = vmatpush.msra.mxu0 %v390
    %v392 = vand.u32 %v54, 4294901760
    %393 = vmatpush.msra.mxu0 %v392
    %v394 = vand.u32 %v53, 4294901760
    %395 = vmatpush.msra.mxu0 %v394
    %v396 = vand.u32 %v52, 4294901760
    %397 = vmatpush.msra.mxu0 %v396
    %v398 = vand.u32 %v51, 4294901760
    %399 = vmatpush.msra.mxu0 %v398
    %v400 = vand.u32 %v50, 4294901760
    %401 = vmatpush.msra.mxu0 %v400
    %v402 = vand.u32 %v49, 4294901760
    %403 = vmatmul.f32.gmra.mxu0 %v402
    %v404 = vpop.f32.mrf.mxu0
    %v405 = vadd.f32 %v368, %v404
    %406 = vdwg.mxu0
    %v407 = vmax.f32 %v405, 0.0
    %s408 = scalar_lea.vmem [#allocation5], 128
    %v409 = vld [vmem:[%s408] sm:$0xff]
    %v410 = vld [vmem:[%s408 + $0x8] sm:$0xff]
    %v411 = vld [vmem:[%s408 + $0x10] sm:$0xff]
    %v412 = vld [vmem:[%s408 + $0x18] sm:$0xff]
    %v413 = vld [vmem:[%s408 + $0x20] sm:$0xff]
    %v414 = vld [vmem:[%s408 + $0x28] sm:$0xff]
    %v415 = vld [vmem:[%s408 + $0x30] sm:$0xff]
    %v416 = vld [vmem:[%s408 + $0x38] sm:$0xff]
    %v417 = vld [vmem:[%s408 + $0x40] sm:$0xff]
    %v418 = vld [vmem:[%s408 + $0x48] sm:$0xff]
    %v419 = vld [vmem:[%s408 + $0x50] sm:$0xff]
    %v420 = vld [vmem:[%s408 + $0x58] sm:$0xff]
    %v421 = vld [vmem:[%s408 + $0x60] sm:$0xff]
    %v422 = vld [vmem:[%s408 + $0x68] sm:$0xff]
    %v423 = vld [vmem:[%s408 + $0x70] sm:$0xff]
    %v424 = vld [vmem:[%s408 + $0x78] sm:$0xff]
    %v425 = vand.u32 %v424, 4294901760
    %426 = vmatpush.msra.mxu0 %v425
    %v427 = vand.u32 %v423, 4294901760
    %428 = vmatpush.msra.mxu0 %v427
    %v429 = vand.u32 %v422, 4294901760
    %430 = vmatpush.msra.mxu0 %v429
    %v431 = vand.u32 %v421, 4294901760
    %432 = vmatpush.msra.mxu0 %v431
    %v433 = vand.u32 %v420, 4294901760
    %434 = vmatpush.msra.mxu0 %v433
    %v435 = vand.u32 %v419, 4294901760
    %436 = vmatpush.msra.mxu0 %v435
    %v437 = vand.u32 %v418, 4294901760
    %438 = vmatpush.msra.mxu0 %v437
    %v439 = vand.u32 %v417, 4294901760
    %440 = vmatpush.msra.mxu0 %v439
    %v441 = vand.u32 %v416, 4294901760
    %442 = vmatpush.msra.mxu0 %v441
    %v443 = vand.u32 %v415, 4294901760
    %444 = vmatpush.msra.mxu0 %v443
    %v445 = vand.u32 %v414, 4294901760
    %446 = vmatpush.msra.mxu0 %v445
    %v447 = vand.u32 %v413, 4294901760
    %448 = vmatpush.msra.mxu0 %v447
    %v449 = vand.u32 %v412, 4294901760
    %450 = vmatpush.msra.mxu0 %v449
    %v451 = vand.u32 %v411, 4294901760
    %452 = vmatpush.msra.mxu0 %v451
    %v453 = vand.u32 %v410, 4294901760
    %454 = vmatpush.msra.mxu0 %v453
    %v455 = vand.u32 %v409, 4294901760
    %456 = vmatpush.msra.mxu0 %v455
    %v457 = vand.u32 %v407, 4294901760
    %v458 = vsub.f32 %v407, %v457
    %v459 = vand.u32 %v458, 4294901760
    %v460 = vsub.f32 %v458, %v459
    %v461 = vand.u32 %v460, 4294901760
    %462 = vmatmul.f32.gmra.mxu0 %v461
    %v463 = vpop.f32.mrf.mxu0
    %v464 = vadd.f32 0.0, %v463
    %465 = vdwg.mxu0
    %v466 = vand.u32 %v424, 4294901760
    %v467 = vsub.f32 %v424, %v466
    %v468 = vand.u32 %v467, 4294901760
    %v469 = vsub.f32 %v467, %v468
    %v470 = vand.u32 %v469, 4294901760
    %471 = vmatpush.msra.mxu0 %v470
    %v472 = vand.u32 %v423, 4294901760
    %v473 = vsub.f32 %v423, %v472
    %v474 = vand.u32 %v473, 4294901760
    %v475 = vsub.f32 %v473, %v474
    %v476 = vand.u32 %v475, 4294901760
    %477 = vmatpush.msra.mxu0 %v476
    %v478 = vand.u32 %v422, 4294901760
    %v479 = vsub.f32 %v422, %v478
    %v480 = vand.u32 %v479, 4294901760
    %v481 = vsub.f32 %v479, %v480
    %v482 = vand.u32 %v481, 4294901760
    %483 = vmatpush.msra.mxu0 %v482
    %v484 = vand.u32 %v421, 4294901760
    %v485 = vsub.f32 %v421, %v484
    %v486 = vand.u32 %v485, 4294901760
    %v487 = vsub.f32 %v485, %v486
    %v488 = vand.u32 %v487, 4294901760
    %489 = vmatpush.msra.mxu0 %v488
    %v490 = vand.u32 %v420, 4294901760
    %v491 = vsub.f32 %v420, %v490
    %v492 = vand.u32 %v491, 4294901760
    %v493 = vsub.f32 %v491, %v492
    %v494 = vand.u32 %v493, 4294901760
    %495 = vmatpush.msra.mxu0 %v494
    %v496 = vand.u32 %v419, 4294901760
    %v497 = vsub.f32 %v419, %v496
    %v498 = vand.u32 %v497, 4294901760
    %v499 = vsub.f32 %v497, %v498
    %v500 = vand.u32 %v499, 4294901760
    %501 = vmatpush.msra.mxu0 %v500
    %v502 = vand.u32 %v418, 4294901760
    %v503 = vsub.f32 %v418, %v502
    %v504 = vand.u32 %v503, 4294901760
    %v505 = vsub.f32 %v503, %v504
    %v506 = vand.u32 %v505, 4294901760
    %507 = vmatpush.msra.mxu0 %v506
    %v508 = vand.u32 %v417, 4294901760
    %v509 = vsub.f32 %v417, %v508
    %v510 = vand.u32 %v509, 4294901760
    %v511 = vsub.f32 %v509, %v510
    %v512 = vand.u32 %v511, 4294901760
    %513 = vmatpush.msra.mxu0 %v512
    %v514 = vand.u32 %v416, 4294901760
    %v515 = vsub.f32 %v416, %v514
    %v516 = vand.u32 %v515, 4294901760
    %v517 = vsub.f32 %v515, %v516
    %v518 = vand.u32 %v517, 4294901760
    %519 = vmatpush.msra.mxu0 %v518
    %v520 = vand.u32 %v415, 4294901760
    %v521 = vsub.f32 %v415, %v520
    %v522 = vand.u32 %v521, 4294901760
    %v523 = vsub.f32 %v521, %v522
    %v524 = vand.u32 %v523, 4294901760
    %525 = vmatpush.msra.mxu0 %v524
    %v526 = vand.u32 %v414, 4294901760
    %v527 = vsub.f32 %v414, %v526
    %v528 = vand.u32 %v527, 4294901760
    %v529 = vsub.f32 %v527, %v528
    %v530 = vand.u32 %v529, 4294901760
    %531 = vmatpush.msra.mxu0 %v530
    %v532 = vand.u32 %v413, 4294901760
    %v533 = vsub.f32 %v413, %v532
    %v534 = vand.u32 %v533, 4294901760
    %v535 = vsub.f32 %v533, %v534
    %v536 = vand.u32 %v535, 4294901760
    %537 = vmatpush.msra.mxu0 %v536
    %v538 = vand.u32 %v412, 4294901760
    %v539 = vsub.f32 %v412, %v538
    %v540 = vand.u32 %v539, 4294901760
    %v541 = vsub.f32 %v539, %v540
    %v542 = vand.u32 %v541, 4294901760
    %543 = vmatpush.msra.mxu0 %v542
    %v544 = vand.u32 %v411, 4294901760
    %v545 = vsub.f32 %v411, %v544
    %v546 = vand.u32 %v545, 4294901760
    %v547 = vsub.f32 %v545, %v546
    %v548 = vand.u32 %v547, 4294901760
    %549 = vmatpush.msra.mxu0 %v548
    %v550 = vand.u32 %v410, 4294901760
    %v551 = vsub.f32 %v410, %v550
    %v552 = vand.u32 %v551, 4294901760
    %v553 = vsub.f32 %v551, %v552
    %v554 = vand.u32 %v553, 4294901760
    %555 = vmatpush.msra.mxu0 %v554
    %v556 = vand.u32 %v409, 4294901760
    %v557 = vsub.f32 %v409, %v556
    %v558 = vand.u32 %v557, 4294901760
    %v559 = vsub.f32 %v557, %v558
    %v560 = vand.u32 %v559, 4294901760
    %561 = vmatpush.msra.mxu0 %v560
    %v562 = vand.u32 %v407, 4294901760
    %563 = vmatmul.f32.gmra.mxu0 %v562
    %v564 = vpop.f32.mrf.mxu0
    %v565 = vadd.f32 %v464, %v564
    %566 = vdwg.mxu0
    %v567 = vand.u32 %v424, 4294901760
    %v568 = vsub.f32 %v424, %v567
    %569 = vmatpush.msra.mxu0 %v568
    %v570 = vand.u32 %v423, 4294901760
    %v571 = vsub.f32 %v423, %v570
    %572 = vmatpush.msra.mxu0 %v571
    %v573 = vand.u32 %v422, 4294901760
    %v574 = vsub.f32 %v422, %v573
    %575 = vmatpush.msra.mxu0 %v574
    %v576 = vand.u32 %v421, 4294901760
    %v577 = vsub.f32 %v421, %v576
    %578 = vmatpush.msra.mxu0 %v577
    %v579 = vand.u32 %v420, 4294901760
    %v580 = vsub.f32 %v420, %v579
    %581 = vmatpush.msra.mxu0 %v580
    %v582 = vand.u32 %v419, 4294901760
    %v583 = vsub.f32 %v419, %v582
    %584 = vmatpush.msra.mxu0 %v583
    %v585 = vand.u32 %v418, 4294901760
    %v586 = vsub.f32 %v418, %v585
    %587 = vmatpush.msra.mxu0 %v586
    %v588 = vand.u32 %v417, 4294901760
    %v589 = vsub.f32 %v417, %v588
    %590 = vmatpush.msra.mxu0 %v589
    %v591 = vand.u32 %v416, 4294901760
    %v592 = vsub.f32 %v416, %v591
    %593 = vmatpush.msra.mxu0 %v592
    %v594 = vand.u32 %v415, 4294901760
    %v595 = vsub.f32 %v415, %v594
    %596 = vmatpush.msra.mxu0 %v595
    %v597 = vand.u32 %v414, 4294901760
    %v598 = vsub.f32 %v414, %v597
    %599 = vmatpush.msra.mxu0 %v598
    %v600 = vand.u32 %v413, 4294901760
    %v601 = vsub.f32 %v413, %v600
    %602 = vmatpush.msra.mxu0 %v601
    %v603 = vand.u32 %v412, 4294901760
    %v604 = vsub.f32 %v412, %v603
    %605 = vmatpush.msra.mxu0 %v604
    %v606 = vand.u32 %v411, 4294901760
    %v607 = vsub.f32 %v411, %v606
    %608 = vmatpush.msra.mxu0 %v607
    %v609 = vand.u32 %v410, 4294901760
    %v610 = vsub.f32 %v410, %v609
    %611 = vmatpush.msra.mxu0 %v610
    %v612 = vand.u32 %v409, 4294901760
    %v613 = vsub.f32 %v409, %v612
    %614 = vmatpush.msra.mxu0 %v613
    %v615 = vand.u32 %v407, 4294901760
    %v616 = vsub.f32 %v407, %v615
    %617 = vmatmul.f32.gmra.mxu0 %v616
    %v618 = vpop.f32.mrf.mxu0
    %v619 = vadd.f32 %v565, %v618
    %620 = vdwg.mxu0
    %v621 = vand.u32 %v424, 4294901760
    %622 = vmatpush.msra.mxu0 %v621
    %v623 = vand.u32 %v423, 4294901760
    %624 = vmatpush.msra.mxu0 %v623
    %v625 = vand.u32 %v422, 4294901760
    %626 = vmatpush.msra.mxu0 %v625
    %v627 = vand.u32 %v421, 4294901760
    %628 = vmatpush.msra.mxu0 %v627
    %v629 = vand.u32 %v420, 4294901760
    %630 = vmatpush.msra.mxu0 %v629
    %v631 = vand.u32 %v419, 4294901760
    %632 = vmatpush.msra.mxu0 %v631
    %v633 = vand.u32 %v418, 4294901760
    %634 = vmatpush.msra.mxu0 %v633
    %v635 = vand.u32 %v417, 4294901760
    %636 = vmatpush.msra.mxu0 %v635
    %v637 = vand.u32 %v416, 4294901760
    %638 = vmatpush.msra.mxu0 %v637
    %v639 = vand.u32 %v415, 4294901760
    %640 = vmatpush.msra.mxu0 %v639
    %v641 = vand.u32 %v414, 4294901760
    %642 = vmatpush.msra.mxu0 %v641
    %v643 = vand.u32 %v413, 4294901760
    %644 = vmatpush.msra.mxu0 %v643
    %v645 = vand.u32 %v412, 4294901760
    %646 = vmatpush.msra.mxu0 %v645
    %v647 = vand.u32 %v411, 4294901760
    %648 = vmatpush.msra.mxu0 %v647
    %v649 = vand.u32 %v410, 4294901760
    %650 = vmatpush.msra.mxu0 %v649
    %v651 = vand.u32 %v409, 4294901760
    %652 = vmatpush.msra.mxu0 %v651
    %v653 = vand.u32 %v407, 4294901760
    %v654 = vsub.f32 %v407, %v653
    %v655 = vand.u32 %v654, 4294901760
    %656 = vmatmul.f32.gmra.mxu0 %v655
    %v657 = vpop.f32.mrf.mxu0
    %v658 = vadd.f32 %v619, %v657
    %659 = vdwg.mxu0
    %v660 = vand.u32 %v424, 4294901760
    %v661 = vsub.f32 %v424, %v660
    %v662 = vand.u32 %v661, 4294901760
    %663 = vmatpush.msra.mxu0 %v662
    %v664 = vand.u32 %v423, 4294901760
    %v665 = vsub.f32 %v423, %v664
    %v666 = vand.u32 %v665, 4294901760
    %667 = vmatpush.msra.mxu0 %v666
    %v668 = vand.u32 %v422, 4294901760
    %v669 = vsub.f32 %v422, %v668
    %v670 = vand.u32 %v669, 4294901760
    %671 = vmatpush.msra.mxu0 %v670
    %v672 = vand.u32 %v421, 4294901760
    %v673 = vsub.f32 %v421, %v672
    %v674 = vand.u32 %v673, 4294901760
    %675 = vmatpush.msra.mxu0 %v674
    %v676 = vand.u32 %v420, 4294901760
    %v677 = vsub.f32 %v420, %v676
    %v678 = vand.u32 %v677, 4294901760
    %679 = vmatpush.msra.mxu0 %v678
    %v680 = vand.u32 %v419, 4294901760
    %v681 = vsub.f32 %v419, %v680
    %v682 = vand.u32 %v681, 4294901760
    %683 = vmatpush.msra.mxu0 %v682
    %v684 = vand.u32 %v418, 4294901760
    %v685 = vsub.f32 %v418, %v684
    %v686 = vand.u32 %v685, 4294901760
    %687 = vmatpush.msra.mxu0 %v686
    %v688 = vand.u32 %v417, 4294901760
    %v689 = vsub.f32 %v417, %v688
    %v690 = vand.u32 %v689, 4294901760
    %691 = vmatpush.msra.mxu0 %v690
    %v692 = vand.u32 %v416, 4294901760
    %v693 = vsub.f32 %v416, %v692
    %v694 = vand.u32 %v693, 4294901760
    %695 = vmatpush.msra.mxu0 %v694
    %v696 = vand.u32 %v415, 4294901760
    %v697 = vsub.f32 %v415, %v696
    %v698 = vand.u32 %v697, 4294901760
    %699 = vmatpush.msra.mxu0 %v698
    %v700 = vand.u32 %v414, 4294901760
    %v701 = vsub.f32 %v414, %v700
    %v702 = vand.u32 %v701, 4294901760
    %703 = vmatpush.msra.mxu0 %v702
    %v704 = vand.u32 %v413, 4294901760
    %v705 = vsub.f32 %v413, %v704
    %v706 = vand.u32 %v705, 4294901760
    %707 = vmatpush.msra.mxu0 %v706
    %v708 = vand.u32 %v412, 4294901760
    %v709 = vsub.f32 %v412, %v708
    %v710 = vand.u32 %v709, 4294901760
    %711 = vmatpush.msra.mxu0 %v710
    %v712 = vand.u32 %v411, 4294901760
    %v713 = vsub.f32 %v411, %v712
    %v714 = vand.u32 %v713, 4294901760
    %715 = vmatpush.msra.mxu0 %v714
    %v716 = vand.u32 %v410, 4294901760
    %v717 = vsub.f32 %v410, %v716
    %v718 = vand.u32 %v717, 4294901760
    %719 = vmatpush.msra.mxu0 %v718
    %v720 = vand.u32 %v409, 4294901760
    %v721 = vsub.f32 %v409, %v720
    %v722 = vand.u32 %v721, 4294901760
    %723 = vmatpush.msra.mxu0 %v722
    %v724 = vand.u32 %v407, 4294901760
    %725 = vmatmul.f32.gmra.mxu0 %v724
    %v726 = vpop.f32.mrf.mxu0
    %v727 = vadd.f32 %v658, %v726
    %728 = vdwg.mxu0
    %v729 = vand.u32 %v424, 4294901760
    %730 = vmatpush.msra.mxu0 %v729
    %v731 = vand.u32 %v423, 4294901760
    %732 = vmatpush.msra.mxu0 %v731
    %v733 = vand.u32 %v422, 4294901760
    %734 = vmatpush.msra.mxu0 %v733
    %v735 = vand.u32 %v421, 4294901760
    %736 = vmatpush.msra.mxu0 %v735
    %v737 = vand.u32 %v420, 4294901760
    %738 = vmatpush.msra.mxu0 %v737
    %v739 = vand.u32 %v419, 4294901760
    %740 = vmatpush.msra.mxu0 %v739
    %v741 = vand.u32 %v418, 4294901760
    %742 = vmatpush.msra.mxu0 %v741
    %v743 = vand.u32 %v417, 4294901760
    %744 = vmatpush.msra.mxu0 %v743
    %v745 = vand.u32 %v416, 4294901760
    %746 = vmatpush.msra.mxu0 %v745
    %v747 = vand.u32 %v415, 4294901760
    %748 = vmatpush.msra.mxu0 %v747
    %v749 = vand.u32 %v414, 4294901760
    %750 = vmatpush.msra.mxu0 %v749
    %v751 = vand.u32 %v413, 4294901760
    %752 = vmatpush.msra.mxu0 %v751
    %v753 = vand.u32 %v412, 4294901760
    %754 = vmatpush.msra.mxu0 %v753
    %v755 = vand.u32 %v411, 4294901760
    %756 = vmatpush.msra.mxu0 %v755
    %v757 = vand.u32 %v410, 4294901760
    %758 = vmatpush.msra.mxu0 %v757
    %v759 = vand.u32 %v409, 4294901760
    %760 = vmatpush.msra.mxu0 %v759
    %v761 = vand.u32 %v407, 4294901760
    %762 = vmatmul.f32.gmra.mxu0 %v761
    %v763 = vpop.f32.mrf.mxu0
    %v764 = vadd.f32 %v727, %v763
    %765 = vdwg.mxu0
    %v766 = vmax.f32 %v764, 0.0
    %s767 = scalar_lea.vmem [#allocation5], 256
    %v768 = vld [vmem:[%s767] sm:$0xff]
    %v769 = vld [vmem:[%s767 + $0x8] sm:$0xff]
    %v770 = vld [vmem:[%s767 + $0x10] sm:$0xff]
    %v771 = vld [vmem:[%s767 + $0x18] sm:$0xff]
    %v772 = vld [vmem:[%s767 + $0x20] sm:$0xff]
    %v773 = vld [vmem:[%s767 + $0x28] sm:$0xff]
    %v774 = vld [vmem:[%s767 + $0x30] sm:$0xff]
    %v775 = vld [vmem:[%s767 + $0x38] sm:$0xff]
    %v776 = vld [vmem:[%s767 + $0x40] sm:$0xff]
    %v777 = vld [vmem:[%s767 + $0x48] sm:$0xff]
    %v778 = vld [vmem:[%s767 + $0x50] sm:$0xff]
    %v779 = vld [vmem:[%s767 + $0x58] sm:$0xff]
    %v780 = vld [vmem:[%s767 + $0x60] sm:$0xff]
    %v781 = vld [vmem:[%s767 + $0x68] sm:$0xff]
    %v782 = vld [vmem:[%s767 + $0x70] sm:$0xff]
    %v783 = vld [vmem:[%s767 + $0x78] sm:$0xff]
    %v784 = vand.u32 %v783, 4294901760
    %785 = vmatpush.msra.mxu0 %v784
    %v786 = vand.u32 %v782, 4294901760
    %787 = vmatpush.msra.mxu0 %v786
    %v788 = vand.u32 %v781, 4294901760
    %789 = vmatpush.msra.mxu0 %v788
    %v790 = vand.u32 %v780, 4294901760
    %791 = vmatpush.msra.mxu0 %v790
    %v792 = vand.u32 %v779, 4294901760
    %793 = vmatpush.msra.mxu0 %v792
    %v794 = vand.u32 %v778, 4294901760
    %795 = vmatpush.msra.mxu0 %v794
    %v796 = vand.u32 %v777, 4294901760
    %797 = vmatpush.msra.mxu0 %v796
    %v798 = vand.u32 %v776, 4294901760
    %799 = vmatpush.msra.mxu0 %v798
    %v800 = vand.u32 %v775, 4294901760
    %801 = vmatpush.msra.mxu0 %v800
    %v802 = vand.u32 %v774, 4294901760
    %803 = vmatpush.msra.mxu0 %v802
    %v804 = vand.u32 %v773, 4294901760
    %805 = vmatpush.msra.mxu0 %v804
    %v806 = vand.u32 %v772, 4294901760
    %807 = vmatpush.msra.mxu0 %v806
    %v808 = vand.u32 %v771, 4294901760
    %809 = vmatpush.msra.mxu0 %v808
    %v810 = vand.u32 %v770, 4294901760
    %811 = vmatpush.msra.mxu0 %v810
    %v812 = vand.u32 %v769, 4294901760
    %813 = vmatpush.msra.mxu0 %v812
    %v814 = vand.u32 %v768, 4294901760
    %815 = vmatpush.msra.mxu0 %v814
    %v816 = vand.u32 %v766, 4294901760
    %v817 = vsub.f32 %v766, %v816
    %v818 = vand.u32 %v817, 4294901760
    %v819 = vsub.f32 %v817, %v818
    %v820 = vand.u32 %v819, 4294901760
    %821 = vmatmul.f32.gmra.mxu0 %v820
    %v822 = vpop.f32.mrf.mxu0
    %v823 = vadd.f32 0.0, %v822
    %824 = vdwg.mxu0
    %v825 = vand.u32 %v783, 4294901760
    %v826 = vsub.f32 %v783, %v825
    %v827 = vand.u32 %v826, 4294901760
    %v828 = vsub.f32 %v826, %v827
    %v829 = vand.u32 %v828, 4294901760
    %830 = vmatpush.msra.mxu0 %v829
    %v831 = vand.u32 %v782, 4294901760
    %v832 = vsub.f32 %v782, %v831
    %v833 = vand.u32 %v832, 4294901760
    %v834 = vsub.f32 %v832, %v833
    %v835 = vand.u32 %v834, 4294901760
    %836 = vmatpush.msra.mxu0 %v835
    %v837 = vand.u32 %v781, 4294901760
    %v838 = vsub.f32 %v781, %v837
    %v839 = vand.u32 %v838, 4294901760
    %v840 = vsub.f32 %v838, %v839
    %v841 = vand.u32 %v840, 4294901760
    %842 = vmatpush.msra.mxu0 %v841
    %v843 = vand.u32 %v780, 4294901760
    %v844 = vsub.f32 %v780, %v843
    %v845 = vand.u32 %v844, 4294901760
    %v846 = vsub.f32 %v844, %v845
    %v847 = vand.u32 %v846, 4294901760
    %848 = vmatpush.msra.mxu0 %v847
    %v849 = vand.u32 %v779, 4294901760
    %v850 = vsub.f32 %v779, %v849
    %v851 = vand.u32 %v850, 4294901760
    %v852 = vsub.f32 %v850, %v851
    %v853 = vand.u32 %v852, 4294901760
    %854 = vmatpush.msra.mxu0 %v853
    %v855 = vand.u32 %v778, 4294901760
    %v856 = vsub.f32 %v778, %v855
    %v857 = vand.u32 %v856, 4294901760
    %v858 = vsub.f32 %v856, %v857
    %v859 = vand.u32 %v858, 4294901760
    %860 = vmatpush.msra.mxu0 %v859
    %v861 = vand.u32 %v777, 4294901760
    %v862 = vsub.f32 %v777, %v861
    %v863 = vand.u32 %v862, 4294901760
    %v864 = vsub.f32 %v862, %v863
    %v865 = vand.u32 %v864, 4294901760
    %866 = vmatpush.msra.mxu0 %v865
    %v867 = vand.u32 %v776, 4294901760
    %v868 = vsub.f32 %v776, %v867
    %v869 = vand.u32 %v868, 4294901760
    %v870 = vsub.f32 %v868, %v869
    %v871 = vand.u32 %v870, 4294901760
    %872 = vmatpush.msra.mxu0 %v871
    %v873 = vand.u32 %v775, 4294901760
    %v874 = vsub.f32 %v775, %v873
    %v875 = vand.u32 %v874, 4294901760
    %v876 = vsub.f32 %v874, %v875
    %v877 = vand.u32 %v876, 4294901760
    %878 = vmatpush.msra.mxu0 %v877
    %v879 = vand.u32 %v774, 4294901760
    %v880 = vsub.f32 %v774, %v879
    %v881 = vand.u32 %v880, 4294901760
    %v882 = vsub.f32 %v880, %v881
    %v883 = vand.u32 %v882, 4294901760
    %884 = vmatpush.msra.mxu0 %v883
    %v885 = vand.u32 %v773, 4294901760
    %v886 = vsub.f32 %v773, %v885
    %v887 = vand.u32 %v886, 4294901760
    %v888 = vsub.f32 %v886, %v887
    %v889 = vand.u32 %v888, 4294901760
    %890 = vmatpush.msra.mxu0 %v889
    %v891 = vand.u32 %v772, 4294901760
    %v892 = vsub.f32 %v772, %v891
    %v893 = vand.u32 %v892, 4294901760
    %v894 = vsub.f32 %v892, %v893
    %v895 = vand.u32 %v894, 4294901760
    %896 = vmatpush.msra.mxu0 %v895
    %v897 = vand.u32 %v771, 4294901760
    %v898 = vsub.f32 %v771, %v897
    %v899 = vand.u32 %v898, 4294901760
    %v900 = vsub.f32 %v898, %v899
    %v901 = vand.u32 %v900, 4294901760
    %902 = vmatpush.msra.mxu0 %v901
    %v903 = vand.u32 %v770, 4294901760
    %v904 = vsub.f32 %v770, %v903
    %v905 = vand.u32 %v904, 4294901760
    %v906 = vsub.f32 %v904, %v905
    %v907 = vand.u32 %v906, 4294901760
    %908 = vmatpush.msra.mxu0 %v907
    %v909 = vand.u32 %v769, 4294901760
    %v910 = vsub.f32 %v769, %v909
    %v911 = vand.u32 %v910, 4294901760
    %v912 = vsub.f32 %v910, %v911
    %v913 = vand.u32 %v912, 4294901760
    %914 = vmatpush.msra.mxu0 %v913
    %v915 = vand.u32 %v768, 4294901760
    %v916 = vsub.f32 %v768, %v915
    %v917 = vand.u32 %v916, 4294901760
    %v918 = vsub.f32 %v916, %v917
    %v919 = vand.u32 %v918, 4294901760
    %920 = vmatpush.msra.mxu0 %v919
    %v921 = vand.u32 %v766, 4294901760
    %922 = vmatmul.f32.gmra.mxu0 %v921
    %v923 = vpop.f32.mrf.mxu0
    %v924 = vadd.f32 %v823, %v923
    %925 = vdwg.mxu0
    %v926 = vand.u32 %v783, 4294901760
    %v927 = vsub.f32 %v783, %v926
    %928 = vmatpush.msra.mxu0 %v927
    %v929 = vand.u32 %v782, 4294901760
    %v930 = vsub.f32 %v782, %v929
    %931 = vmatpush.msra.mxu0 %v930
    %v932 = vand.u32 %v781, 4294901760
    %v933 = vsub.f32 %v781, %v932
    %934 = vmatpush.msra.mxu0 %v933
    %v935 = vand.u32 %v780, 4294901760
    %v936 = vsub.f32 %v780, %v935
    %937 = vmatpush.msra.mxu0 %v936
    %v938 = vand.u32 %v779, 4294901760
    %v939 = vsub.f32 %v779, %v938
    %940 = vmatpush.msra.mxu0 %v939
    %v941 = vand.u32 %v778, 4294901760
    %v942 = vsub.f32 %v778, %v941
    %943 = vmatpush.msra.mxu0 %v942
    %v944 = vand.u32 %v777, 4294901760
    %v945 = vsub.f32 %v777, %v944
    %946 = vmatpush.msra.mxu0 %v945
    %v947 = vand.u32 %v776, 4294901760
    %v948 = vsub.f32 %v776, %v947
    %949 = vmatpush.msra.mxu0 %v948
    %v950 = vand.u32 %v775, 4294901760
    %v951 = vsub.f32 %v775, %v950
    %952 = vmatpush.msra.mxu0 %v951
    %v953 = vand.u32 %v774, 4294901760
    %v954 = vsub.f32 %v774, %v953
    %955 = vmatpush.msra.mxu0 %v954
    %v956 = vand.u32 %v773, 4294901760
    %v957 = vsub.f32 %v773, %v956
    %958 = vmatpush.msra.mxu0 %v957
    %v959 = vand.u32 %v772, 4294901760
    %v960 = vsub.f32 %v772, %v959
    %961 = vmatpush.msra.mxu0 %v960
    %v962 = vand.u32 %v771, 4294901760
    %v963 = vsub.f32 %v771, %v962
    %964 = vmatpush.msra.mxu0 %v963
    %v965 = vand.u32 %v770, 4294901760
    %v966 = vsub.f32 %v770, %v965
    %967 = vmatpush.msra.mxu0 %v966
    %v968 = vand.u32 %v769, 4294901760
    %v969 = vsub.f32 %v769, %v968
    %970 = vmatpush.msra.mxu0 %v969
    %v971 = vand.u32 %v768, 4294901760
    %v972 = vsub.f32 %v768, %v971
    %973 = vmatpush.msra.mxu0 %v972
    %v974 = vand.u32 %v766, 4294901760
    %v975 = vsub.f32 %v766, %v974
    %976 = vmatmul.f32.gmra.mxu0 %v975
    %v977 = vpop.f32.mrf.mxu0
    %v978 = vadd.f32 %v924, %v977
    %979 = vdwg.mxu0
    %v980 = vand.u32 %v783, 4294901760
    %981 = vmatpush.msra.mxu0 %v980
    %v982 = vand.u32 %v782, 4294901760
    %983 = vmatpush.msra.mxu0 %v982
    %v984 = vand.u32 %v781, 4294901760
    %985 = vmatpush.msra.mxu0 %v984
    %v986 = vand.u32 %v780, 4294901760
    %987 = vmatpush.msra.mxu0 %v986
    %v988 = vand.u32 %v779, 4294901760
    %989 = vmatpush.msra.mxu0 %v988
    %v990 = vand.u32 %v778, 4294901760
    %991 = vmatpush.msra.mxu0 %v990
    %v992 = vand.u32 %v777, 4294901760
    %993 = vmatpush.msra.mxu0 %v992
    %v994 = vand.u32 %v776, 4294901760
    %995 = vmatpush.msra.mxu0 %v994
    %v996 = vand.u32 %v775, 4294901760
    %997 = vmatpush.msra.mxu0 %v996
    %v998 = vand.u32 %v774, 4294901760
    %999 = vmatpush.msra.mxu0 %v998
    %v1000 = vand.u32 %v773, 4294901760
    %1001 = vmatpush.msra.mxu0 %v1000
    %v1002 = vand.u32 %v772, 4294901760
    %1003 = vmatpush.msra.mxu0 %v1002
    %v1004 = vand.u32 %v771, 4294901760
    %1005 = vmatpush.msra.mxu0 %v1004
    %v1006 = vand.u32 %v770, 4294901760
    %1007 = vmatpush.msra.mxu0 %v1006
    %v1008 = vand.u32 %v769, 4294901760
    %1009 = vmatpush.msra.mxu0 %v1008
    %v1010 = vand.u32 %v768, 4294901760
    %1011 = vmatpush.msra.mxu0 %v1010
    %v1012 = vand.u32 %v766, 4294901760
    %v1013 = vsub.f32 %v766, %v1012
    %v1014 = vand.u32 %v1013, 4294901760
    %1015 = vmatmul.f32.gmra.mxu0 %v1014
    %v1016 = vpop.f32.mrf.mxu0
    %v1017 = vadd.f32 %v978, %v1016
    %1018 = vdwg.mxu0
    %v1019 = vand.u32 %v783, 4294901760
    %v1020 = vsub.f32 %v783, %v1019
    %v1021 = vand.u32 %v1020, 4294901760
    %1022 = vmatpush.msra.mxu0 %v1021
    %v1023 = vand.u32 %v782, 4294901760
    %v1024 = vsub.f32 %v782, %v1023
    %v1025 = vand.u32 %v1024, 4294901760
    %1026 = vmatpush.msra.mxu0 %v1025
    %v1027 = vand.u32 %v781, 4294901760
    %v1028 = vsub.f32 %v781, %v1027
    %v1029 = vand.u32 %v1028, 4294901760
    %1030 = vmatpush.msra.mxu0 %v1029
    %v1031 = vand.u32 %v780, 4294901760
    %v1032 = vsub.f32 %v780, %v1031
    %v1033 = vand.u32 %v1032, 4294901760
    %1034 = vmatpush.msra.mxu0 %v1033
    %v1035 = vand.u32 %v779, 4294901760
    %v1036 = vsub.f32 %v779, %v1035
    %v1037 = vand.u32 %v1036, 4294901760
    %1038 = vmatpush.msra.mxu0 %v1037
    %v1039 = vand.u32 %v778, 4294901760
    %v1040 = vsub.f32 %v778, %v1039
    %v1041 = vand.u32 %v1040, 4294901760
    %1042 = vmatpush.msra.mxu0 %v1041
    %v1043 = vand.u32 %v777, 4294901760
    %v1044 = vsub.f32 %v777, %v1043
    %v1045 = vand.u32 %v1044, 4294901760
    %1046 = vmatpush.msra.mxu0 %v1045
    %v1047 = vand.u32 %v776, 4294901760
    %v1048 = vsub.f32 %v776, %v1047
    %v1049 = vand.u32 %v1048, 4294901760
    %1050 = vmatpush.msra.mxu0 %v1049
    %v1051 = vand.u32 %v775, 4294901760
    %v1052 = vsub.f32 %v775, %v1051
    %v1053 = vand.u32 %v1052, 4294901760
    %1054 = vmatpush.msra.mxu0 %v1053
    %v1055 = vand.u32 %v774, 4294901760
    %v1056 = vsub.f32 %v774, %v1055
    %v1057 = vand.u32 %v1056, 4294901760
    %1058 = vmatpush.msra.mxu0 %v1057
    %v1059 = vand.u32 %v773, 4294901760
    %v1060 = vsub.f32 %v773, %v1059
    %v1061 = vand.u32 %v1060, 4294901760
    %1062 = vmatpush.msra.mxu0 %v1061
    %v1063 = vand.u32 %v772, 4294901760
    %v1064 = vsub.f32 %v772, %v1063
    %v1065 = vand.u32 %v1064, 4294901760
    %1066 = vmatpush.msra.mxu0 %v1065
    %v1067 = vand.u32 %v771, 4294901760
    %v1068 = vsub.f32 %v771, %v1067
    %v1069 = vand.u32 %v1068, 4294901760
    %1070 = vmatpush.msra.mxu0 %v1069
    %v1071 = vand.u32 %v770, 4294901760
    %v1072 = vsub.f32 %v770, %v1071
    %v1073 = vand.u32 %v1072, 4294901760
    %1074 = vmatpush.msra.mxu0 %v1073
    %v1075 = vand.u32 %v769, 4294901760
    %v1076 = vsub.f32 %v769, %v1075
    %v1077 = vand.u32 %v1076, 4294901760
    %1078 = vmatpush.msra.mxu0 %v1077
    %v1079 = vand.u32 %v768, 4294901760
    %v1080 = vsub.f32 %v768, %v1079
    %v1081 = vand.u32 %v1080, 4294901760
    %1082 = vmatpush.msra.mxu0 %v1081
    %v1083 = vand.u32 %v766, 4294901760
    %1084 = vmatmul.f32.gmra.mxu0 %v1083
    %v1085 = vpop.f32.mrf.mxu0
    %v1086 = vadd.f32 %v1017, %v1085
    %1087 = vdwg.mxu0
    %v1088 = vand.u32 %v783, 4294901760
    %1089 = vmatpush.msra.mxu0 %v1088
    %v1090 = vand.u32 %v782, 4294901760
    %1091 = vmatpush.msra.mxu0 %v1090
    %v1092 = vand.u32 %v781, 4294901760
    %1093 = vmatpush.msra.mxu0 %v1092
    %v1094 = vand.u32 %v780, 4294901760
    %1095 = vmatpush.msra.mxu0 %v1094
    %v1096 = vand.u32 %v779, 4294901760
    %1097 = vmatpush.msra.mxu0 %v1096
    %v1098 = vand.u32 %v778, 4294901760
    %1099 = vmatpush.msra.mxu0 %v1098
    %v1100 = vand.u32 %v777, 4294901760
    %1101 = vmatpush.msra.mxu0 %v1100
    %v1102 = vand.u32 %v776, 4294901760
    %1103 = vmatpush.msra.mxu0 %v1102
    %v1104 = vand.u32 %v775, 4294901760
    %1105 = vmatpush.msra.mxu0 %v1104
    %v1106 = vand.u32 %v774, 4294901760
    %1107 = vmatpush.msra.mxu0 %v1106
    %v1108 = vand.u32 %v773, 4294901760
    %1109 = vmatpush.msra.mxu0 %v1108
    %v1110 = vand.u32 %v772, 4294901760
    %1111 = vmatpush.msra.mxu0 %v1110
    %v1112 = vand.u32 %v771, 4294901760
    %1113 = vmatpush.msra.mxu0 %v1112
    %v1114 = vand.u32 %v770, 4294901760
    %1115 = vmatpush.msra.mxu0 %v1114
    %v1116 = vand.u32 %v769, 4294901760
    %1117 = vmatpush.msra.mxu0 %v1116
    %v1118 = vand.u32 %v768, 4294901760
    %1119 = vmatpush.msra.mxu0 %v1118
    %v1120 = vand.u32 %v766, 4294901760
    %1121 = vmatmul.f32.gmra.mxu0 %v1120
    %v1122 = vpop.f32.mrf.mxu0
    %v1123 = vadd.f32 %v1086, %v1122
    %1124 = vdwg.mxu0
    %v1125 = vmax.f32 %v1123, 0.0
    %s1126 = scalar_lea.vmem [#allocation5], 384
    %v1127 = vld [vmem:[%s1126] sm:$0xff]
    %v1128 = vld [vmem:[%s1126 + $0x8] sm:$0xff]
    %v1129 = vld [vmem:[%s1126 + $0x10] sm:$0xff]
    %v1130 = vld [vmem:[%s1126 + $0x18] sm:$0xff]
    %v1131 = vld [vmem:[%s1126 + $0x20] sm:$0xff]
    %v1132 = vld [vmem:[%s1126 + $0x28] sm:$0xff]
    %v1133 = vld [vmem:[%s1126 + $0x30] sm:$0xff]
    %v1134 = vld [vmem:[%s1126 + $0x38] sm:$0xff]
    %v1135 = vld [vmem:[%s1126 + $0x40] sm:$0xff]
    %v1136 = vld [vmem:[%s1126 + $0x48] sm:$0xff]
    %v1137 = vld [vmem:[%s1126 + $0x50] sm:$0xff]
    %v1138 = vld [vmem:[%s1126 + $0x58] sm:$0xff]
    %v1139 = vld [vmem:[%s1126 + $0x60] sm:$0xff]
    %v1140 = vld [vmem:[%s1126 + $0x68] sm:$0xff]
    %v1141 = vld [vmem:[%s1126 + $0x70] sm:$0xff]
    %v1142 = vld [vmem:[%s1126 + $0x78] sm:$0xff]
    %v1143 = vand.u32 %v1142, 4294901760
    %1144 = vmatpush.msra.mxu0 %v1143
    %v1145 = vand.u32 %v1141, 4294901760
    %1146 = vmatpush.msra.mxu0 %v1145
    %v1147 = vand.u32 %v1140, 4294901760
    %1148 = vmatpush.msra.mxu0 %v1147
    %v1149 = vand.u32 %v1139, 4294901760
    %1150 = vmatpush.msra.mxu0 %v1149
    %v1151 = vand.u32 %v1138, 4294901760
    %1152 = vmatpush.msra.mxu0 %v1151
    %v1153 = vand.u32 %v1137, 4294901760
    %1154 = vmatpush.msra.mxu0 %v1153
    %v1155 = vand.u32 %v1136, 4294901760
    %1156 = vmatpush.msra.mxu0 %v1155
    %v1157 = vand.u32 %v1135, 4294901760
    %1158 = vmatpush.msra.mxu0 %v1157
    %v1159 = vand.u32 %v1134, 4294901760
    %1160 = vmatpush.msra.mxu0 %v1159
    %v1161 = vand.u32 %v1133, 4294901760
    %1162 = vmatpush.msra.mxu0 %v1161
    %v1163 = vand.u32 %v1132, 4294901760
    %1164 = vmatpush.msra.mxu0 %v1163
    %v1165 = vand.u32 %v1131, 4294901760
    %1166 = vmatpush.msra.mxu0 %v1165
    %v1167 = vand.u32 %v1130, 4294901760
    %1168 = vmatpush.msra.mxu0 %v1167
    %v1169 = vand.u32 %v1129, 4294901760
    %1170 = vmatpush.msra.mxu0 %v1169
    %v1171 = vand.u32 %v1128, 4294901760
    %1172 = vmatpush.msra.mxu0 %v1171
    %v1173 = vand.u32 %v1127, 4294901760
    %1174 = vmatpush.msra.mxu0 %v1173
    %v1175 = vand.u32 %v1125, 4294901760
    %v1176 = vsub.f32 %v1125, %v1175
    %v1177 = vand.u32 %v1176, 4294901760
    %v1178 = vsub.f32 %v1176, %v1177
    %v1179 = vand.u32 %v1178, 4294901760
    %1180 = vmatmul.f32.gmra.mxu0 %v1179
    %v1181 = vpop.f32.mrf.mxu0
    %v1182 = vadd.f32 0.0, %v1181
    %1183 = vdwg.mxu0
    %v1184 = vand.u32 %v1142, 4294901760
    %v1185 = vsub.f32 %v1142, %v1184
    %v1186 = vand.u32 %v1185, 4294901760
    %v1187 = vsub.f32 %v1185, %v1186
    %v1188 = vand.u32 %v1187, 4294901760
    %1189 = vmatpush.msra.mxu0 %v1188
    %v1190 = vand.u32 %v1141, 4294901760
    %v1191 = vsub.f32 %v1141, %v1190
    %v1192 = vand.u32 %v1191, 4294901760
    %v1193 = vsub.f32 %v1191, %v1192
    %v1194 = vand.u32 %v1193, 4294901760
    %1195 = vmatpush.msra.mxu0 %v1194
    %v1196 = vand.u32 %v1140, 4294901760
    %v1197 = vsub.f32 %v1140, %v1196
    %v1198 = vand.u32 %v1197, 4294901760
    %v1199 = vsub.f32 %v1197, %v1198
    %v1200 = vand.u32 %v1199, 4294901760
    %1201 = vmatpush.msra.mxu0 %v1200
    %v1202 = vand.u32 %v1139, 4294901760
    %v1203 = vsub.f32 %v1139, %v1202
    %v1204 = vand.u32 %v1203, 4294901760
    %v1205 = vsub.f32 %v1203, %v1204
    %v1206 = vand.u32 %v1205, 4294901760
    %1207 = vmatpush.msra.mxu0 %v1206
    %v1208 = vand.u32 %v1138, 4294901760
    %v1209 = vsub.f32 %v1138, %v1208
    %v1210 = vand.u32 %v1209, 4294901760
    %v1211 = vsub.f32 %v1209, %v1210
    %v1212 = vand.u32 %v1211, 4294901760
    %1213 = vmatpush.msra.mxu0 %v1212
    %v1214 = vand.u32 %v1137, 4294901760
    %v1215 = vsub.f32 %v1137, %v1214
    %v1216 = vand.u32 %v1215, 4294901760
    %v1217 = vsub.f32 %v1215, %v1216
    %v1218 = vand.u32 %v1217, 4294901760
    %1219 = vmatpush.msra.mxu0 %v1218
    %v1220 = vand.u32 %v1136, 4294901760
    %v1221 = vsub.f32 %v1136, %v1220
    %v1222 = vand.u32 %v1221, 4294901760
    %v1223 = vsub.f32 %v1221, %v1222
    %v1224 = vand.u32 %v1223, 4294901760
    %1225 = vmatpush.msra.mxu0 %v1224
    %v1226 = vand.u32 %v1135, 4294901760
    %v1227 = vsub.f32 %v1135, %v1226
    %v1228 = vand.u32 %v1227, 4294901760
    %v1229 = vsub.f32 %v1227, %v1228
    %v1230 = vand.u32 %v1229, 4294901760
    %1231 = vmatpush.msra.mxu0 %v1230
    %v1232 = vand.u32 %v1134, 4294901760
    %v1233 = vsub.f32 %v1134, %v1232
    %v1234 = vand.u32 %v1233, 4294901760
    %v1235 = vsub.f32 %v1233, %v1234
    %v1236 = vand.u32 %v1235, 4294901760
    %1237 = vmatpush.msra.mxu0 %v1236
    %v1238 = vand.u32 %v1133, 4294901760
    %v1239 = vsub.f32 %v1133, %v1238
    %v1240 = vand.u32 %v1239, 4294901760
    %v1241 = vsub.f32 %v1239, %v1240
    %v1242 = vand.u32 %v1241, 4294901760
    %1243 = vmatpush.msra.mxu0 %v1242
    %v1244 = vand.u32 %v1132, 4294901760
    %v1245 = vsub.f32 %v1132, %v1244
    %v1246 = vand.u32 %v1245, 4294901760
    %v1247 = vsub.f32 %v1245, %v1246
    %v1248 = vand.u32 %v1247, 4294901760
    %1249 = vmatpush.msra.mxu0 %v1248
    %v1250 = vand.u32 %v1131, 4294901760
    %v1251 = vsub.f32 %v1131, %v1250
    %v1252 = vand.u32 %v1251, 4294901760
    %v1253 = vsub.f32 %v1251, %v1252
    %v1254 = vand.u32 %v1253, 4294901760
    %1255 = vmatpush.msra.mxu0 %v1254
    %v1256 = vand.u32 %v1130, 4294901760
    %v1257 = vsub.f32 %v1130, %v1256
    %v1258 = vand.u32 %v1257, 4294901760
    %v1259 = vsub.f32 %v1257, %v1258
    %v1260 = vand.u32 %v1259, 4294901760
    %1261 = vmatpush.msra.mxu0 %v1260
    %v1262 = vand.u32 %v1129, 4294901760
    %v1263 = vsub.f32 %v1129, %v1262
    %v1264 = vand.u32 %v1263, 4294901760
    %v1265 = vsub.f32 %v1263, %v1264
    %v1266 = vand.u32 %v1265, 4294901760
    %1267 = vmatpush.msra.mxu0 %v1266
    %v1268 = vand.u32 %v1128, 4294901760
    %v1269 = vsub.f32 %v1128, %v1268
    %v1270 = vand.u32 %v1269, 4294901760
    %v1271 = vsub.f32 %v1269, %v1270
    %v1272 = vand.u32 %v1271, 4294901760
    %1273 = vmatpush.msra.mxu0 %v1272
    %v1274 = vand.u32 %v1127, 4294901760
    %v1275 = vsub.f32 %v1127, %v1274
    %v1276 = vand.u32 %v1275, 4294901760
    %v1277 = vsub.f32 %v1275, %v1276
    %v1278 = vand.u32 %v1277, 4294901760
    %1279 = vmatpush.msra.mxu0 %v1278
    %v1280 = vand.u32 %v1125, 4294901760
    %1281 = vmatmul.f32.gmra.mxu0 %v1280
    %v1282 = vpop.f32.mrf.mxu0
    %v1283 = vadd.f32 %v1182, %v1282
    %1284 = vdwg.mxu0
    %v1285 = vand.u32 %v1142, 4294901760
    %v1286 = vsub.f32 %v1142, %v1285
    %1287 = vmatpush.msra.mxu0 %v1286
    %v1288 = vand.u32 %v1141, 4294901760
    %v1289 = vsub.f32 %v1141, %v1288
    %1290 = vmatpush.msra.mxu0 %v1289
    %v1291 = vand.u32 %v1140, 4294901760
    %v1292 = vsub.f32 %v1140, %v1291
    %1293 = vmatpush.msra.mxu0 %v1292
    %v1294 = vand.u32 %v1139, 4294901760
    %v1295 = vsub.f32 %v1139, %v1294
    %1296 = vmatpush.msra.mxu0 %v1295
    %v1297 = vand.u32 %v1138, 4294901760
    %v1298 = vsub.f32 %v1138, %v1297
    %1299 = vmatpush.msra.mxu0 %v1298
    %v1300 = vand.u32 %v1137, 4294901760
    %v1301 = vsub.f32 %v1137, %v1300
    %1302 = vmatpush.msra.mxu0 %v1301
    %v1303 = vand.u32 %v1136, 4294901760
    %v1304 = vsub.f32 %v1136, %v1303
    %1305 = vmatpush.msra.mxu0 %v1304
    %v1306 = vand.u32 %v1135, 4294901760
    %v1307 = vsub.f32 %v1135, %v1306
    %1308 = vmatpush.msra.mxu0 %v1307
    %v1309 = vand.u32 %v1134, 4294901760
    %v1310 = vsub.f32 %v1134, %v1309
    %1311 = vmatpush.msra.mxu0 %v1310
    %v1312 = vand.u32 %v1133, 4294901760
    %v1313 = vsub.f32 %v1133, %v1312
    %1314 = vmatpush.msra.mxu0 %v1313
    %v1315 = vand.u32 %v1132, 4294901760
    %v1316 = vsub.f32 %v1132, %v1315
    %1317 = vmatpush.msra.mxu0 %v1316
    %v1318 = vand.u32 %v1131, 4294901760
    %v1319 = vsub.f32 %v1131, %v1318
    %1320 = vmatpush.msra.mxu0 %v1319
    %v1321 = vand.u32 %v1130, 4294901760
    %v1322 = vsub.f32 %v1130, %v1321
    %1323 = vmatpush.msra.mxu0 %v1322
    %v1324 = vand.u32 %v1129, 4294901760
    %v1325 = vsub.f32 %v1129, %v1324
    %1326 = vmatpush.msra.mxu0 %v1325
    %v1327 = vand.u32 %v1128, 4294901760
    %v1328 = vsub.f32 %v1128, %v1327
    %1329 = vmatpush.msra.mxu0 %v1328
    %v1330 = vand.u32 %v1127, 4294901760
    %v1331 = vsub.f32 %v1127, %v1330
    %1332 = vmatpush.msra.mxu0 %v1331
    %v1333 = vand.u32 %v1125, 4294901760
    %v1334 = vsub.f32 %v1125, %v1333
    %1335 = vmatmul.f32.gmra.mxu0 %v1334
    %v1336 = vpop.f32.mrf.mxu0
    %v1337 = vadd.f32 %v1283, %v1336
    %1338 = vdwg.mxu0
    %v1339 = vand.u32 %v1142, 4294901760
    %1340 = vmatpush.msra.mxu0 %v1339
    %v1341 = vand.u32 %v1141, 4294901760
    %1342 = vmatpush.msra.mxu0 %v1341
    %v1343 = vand.u32 %v1140, 4294901760
    %1344 = vmatpush.msra.mxu0 %v1343
    %v1345 = vand.u32 %v1139, 4294901760
    %1346 = vmatpush.msra.mxu0 %v1345
    %v1347 = vand.u32 %v1138, 4294901760
    %1348 = vmatpush.msra.mxu0 %v1347
    %v1349 = vand.u32 %v1137, 4294901760
    %1350 = vmatpush.msra.mxu0 %v1349
    %v1351 = vand.u32 %v1136, 4294901760
    %1352 = vmatpush.msra.mxu0 %v1351
    %v1353 = vand.u32 %v1135, 4294901760
    %1354 = vmatpush.msra.mxu0 %v1353
    %v1355 = vand.u32 %v1134, 4294901760
    %1356 = vmatpush.msra.mxu0 %v1355
    %v1357 = vand.u32 %v1133, 4294901760
    %1358 = vmatpush.msra.mxu0 %v1357
    %v1359 = vand.u32 %v1132, 4294901760
    %1360 = vmatpush.msra.mxu0 %v1359
    %v1361 = vand.u32 %v1131, 4294901760
    %1362 = vmatpush.msra.mxu0 %v1361
    %v1363 = vand.u32 %v1130, 4294901760
    %1364 = vmatpush.msra.mxu0 %v1363
    %v1365 = vand.u32 %v1129, 4294901760
    %1366 = vmatpush.msra.mxu0 %v1365
    %v1367 = vand.u32 %v1128, 4294901760
    %1368 = vmatpush.msra.mxu0 %v1367
    %v1369 = vand.u32 %v1127, 4294901760
    %1370 = vmatpush.msra.mxu0 %v1369
    %v1371 = vand.u32 %v1125, 4294901760
    %v1372 = vsub.f32 %v1125, %v1371
    %v1373 = vand.u32 %v1372, 4294901760
    %1374 = vmatmul.f32.gmra.mxu0 %v1373
    %v1375 = vpop.f32.mrf.mxu0
    %v1376 = vadd.f32 %v1337, %v1375
    %1377 = vdwg.mxu0
    %v1378 = vand.u32 %v1142, 4294901760
    %v1379 = vsub.f32 %v1142, %v1378
    %v1380 = vand.u32 %v1379, 4294901760
    %1381 = vmatpush.msra.mxu0 %v1380
    %v1382 = vand.u32 %v1141, 4294901760
    %v1383 = vsub.f32 %v1141, %v1382
    %v1384 = vand.u32 %v1383, 4294901760
    %1385 = vmatpush.msra.mxu0 %v1384
    %v1386 = vand.u32 %v1140, 4294901760
    %v1387 = vsub.f32 %v1140, %v1386
    %v1388 = vand.u32 %v1387, 4294901760
    %1389 = vmatpush.msra.mxu0 %v1388
    %v1390 = vand.u32 %v1139, 4294901760
    %v1391 = vsub.f32 %v1139, %v1390
    %v1392 = vand.u32 %v1391, 4294901760
    %1393 = vmatpush.msra.mxu0 %v1392
    %v1394 = vand.u32 %v1138, 4294901760
    %v1395 = vsub.f32 %v1138, %v1394
    %v1396 = vand.u32 %v1395, 4294901760
    %1397 = vmatpush.msra.mxu0 %v1396
    %v1398 = vand.u32 %v1137, 4294901760
    %v1399 = vsub.f32 %v1137, %v1398
    %v1400 = vand.u32 %v1399, 4294901760
    %1401 = vmatpush.msra.mxu0 %v1400
    %v1402 = vand.u32 %v1136, 4294901760
    %v1403 = vsub.f32 %v1136, %v1402
    %v1404 = vand.u32 %v1403, 4294901760
    %1405 = vmatpush.msra.mxu0 %v1404
    %v1406 = vand.u32 %v1135, 4294901760
    %v1407 = vsub.f32 %v1135, %v1406
    %v1408 = vand.u32 %v1407, 4294901760
    %1409 = vmatpush.msra.mxu0 %v1408
    %v1410 = vand.u32 %v1134, 4294901760
    %v1411 = vsub.f32 %v1134, %v1410
    %v1412 = vand.u32 %v1411, 4294901760
    %1413 = vmatpush.msra.mxu0 %v1412
    %v1414 = vand.u32 %v1133, 4294901760
    %v1415 = vsub.f32 %v1133, %v1414
    %v1416 = vand.u32 %v1415, 4294901760
    %1417 = vmatpush.msra.mxu0 %v1416
    %v1418 = vand.u32 %v1132, 4294901760
    %v1419 = vsub.f32 %v1132, %v1418
    %v1420 = vand.u32 %v1419, 4294901760
    %1421 = vmatpush.msra.mxu0 %v1420
    %v1422 = vand.u32 %v1131, 4294901760
    %v1423 = vsub.f32 %v1131, %v1422
    %v1424 = vand.u32 %v1423, 4294901760
    %1425 = vmatpush.msra.mxu0 %v1424
    %v1426 = vand.u32 %v1130, 4294901760
    %v1427 = vsub.f32 %v1130, %v1426
    %v1428 = vand.u32 %v1427, 4294901760
    %1429 = vmatpush.msra.mxu0 %v1428
    %v1430 = vand.u32 %v1129, 4294901760
    %v1431 = vsub.f32 %v1129, %v1430
    %v1432 = vand.u32 %v1431, 4294901760
    %1433 = vmatpush.msra.mxu0 %v1432
    %v1434 = vand.u32 %v1128, 4294901760
    %v1435 = vsub.f32 %v1128, %v1434
    %v1436 = vand.u32 %v1435, 4294901760
    %1437 = vmatpush.msra.mxu0 %v1436
    %v1438 = vand.u32 %v1127, 4294901760
    %v1439 = vsub.f32 %v1127, %v1438
    %v1440 = vand.u32 %v1439, 4294901760
    %1441 = vmatpush.msra.mxu0 %v1440
    %v1442 = vand.u32 %v1125, 4294901760
    %1443 = vmatmul.f32.gmra.mxu0 %v1442
    %v1444 = vpop.f32.mrf.mxu0
    %v1445 = vadd.f32 %v1376, %v1444
    %1446 = vdwg.mxu0
    %v1447 = vand.u32 %v1142, 4294901760
    %1448 = vmatpush.msra.mxu0 %v1447
    %v1449 = vand.u32 %v1141, 4294901760
    %1450 = vmatpush.msra.mxu0 %v1449
    %v1451 = vand.u32 %v1140, 4294901760
    %1452 = vmatpush.msra.mxu0 %v1451
    %v1453 = vand.u32 %v1139, 4294901760
    %1454 = vmatpush.msra.mxu0 %v1453
    %v1455 = vand.u32 %v1138, 4294901760
    %1456 = vmatpush.msra.mxu0 %v1455
    %v1457 = vand.u32 %v1137, 4294901760
    %1458 = vmatpush.msra.mxu0 %v1457
    %v1459 = vand.u32 %v1136, 4294901760
    %1460 = vmatpush.msra.mxu0 %v1459
    %v1461 = vand.u32 %v1135, 4294901760
    %1462 = vmatpush.msra.mxu0 %v1461
    %v1463 = vand.u32 %v1134, 4294901760
    %1464 = vmatpush.msra.mxu0 %v1463
    %v1465 = vand.u32 %v1133, 4294901760
    %1466 = vmatpush.msra.mxu0 %v1465
    %v1467 = vand.u32 %v1132, 4294901760
    %1468 = vmatpush.msra.mxu0 %v1467
    %v1469 = vand.u32 %v1131, 4294901760
    %1470 = vmatpush.msra.mxu0 %v1469
    %v1471 = vand.u32 %v1130, 4294901760
    %1472 = vmatpush.msra.mxu0 %v1471
    %v1473 = vand.u32 %v1129, 4294901760
    %1474 = vmatpush.msra.mxu0 %v1473
    %v1475 = vand.u32 %v1128, 4294901760
    %1476 = vmatpush.msra.mxu0 %v1475
    %v1477 = vand.u32 %v1127, 4294901760
    %1478 = vmatpush.msra.mxu0 %v1477
    %v1479 = vand.u32 %v1125, 4294901760
    %1480 = vmatmul.f32.gmra.mxu0 %v1479
    %v1481 = vpop.f32.mrf.mxu0
    %v1482 = vadd.f32 %v1445, %v1481
    %1483 = vdwg.mxu0
    %vm1484 = vcmask 23552
    %1485 = vst.msk [vmem:[%s2] sm:$0xff] %vm1484, %v1482
    // Predicated region
    $region18: #{mlp_forward.1} parent=1 // pred_check
      _
    $region19: #{mlp_forward.1} parent=1 // pred_check_branch
      %1487 = sbr.rel (0) target = $region21
    $region20: #{mlp_forward.1} parent=1 // pred_region
      _
    $region21: #{mlp_forward.1} parent=1 // pred_fallthru
      _
    // Predicated region
    $region22: #{mlp_forward.1} parent=1 // pred_check
      _
    $region23: #{mlp_forward.1} parent=1 // pred_check_branch
      %1489 = sbr.rel (0) target = $region25
    $region24: #{mlp_forward.1} parent=1 // pred_region
      _
    $region25: #{mlp_forward.1} parent=1 // pred_fallthru
      _
    %1490 = vsyncpa [#allocation4], 1
    %1491 = vsyncpa [#allocation6], 1

</llo_original>
